<compile_context>
chip_gen: v7x
topology: tpu7x:2x2x1
jax: 0.10.0
libtpu: 0.0.40
codegen_flags: <defaults>
</compile_context>

<pallas_src>
import functools

import jax
import jax.numpy as jnp
from jax import lax
from jax.experimental import pallas as pl
from jax.experimental.pallas import tpu as pltpu


def _lane_lshift(x, off, lp):
    """result[:, m] = x[:, (m + off) % lp] — a single static XLU lane rotation."""
    if off == 0:
        return x
    return pltpu.roll(x, lp - off, axis=1)


def _dsconv3d_kernel(x_ref, dww_ref, pw_ref, bias_ref, out_ref,
                     *, k, kpl, cout, Do, Wp, LP):
    # x_ref   : VMEM (Dp, LP)       one padded input channel, (Hp*Wp) flat on lanes
    # dww_ref : SMEM (cmid, k^3)    depthwise taps (scalar reads)
    # pw_ref  : SMEM (cout, cmid)   pointwise weights (scalar reads)
    # bias_ref: SMEM (cout,)        pointwise bias + pw @ depthwise bias (exact fold)
    # out_ref : VMEM (cout, Do, LP) lane-padded output, resident across the cin axis
    c = pl.program_id(1)

    @pl.when(c == 0)
    def _init():
        for o in range(cout):
            out_ref[o] = jnp.full((Do, LP), bias_ref[o], dtype=out_ref.dtype)

    # Depthwise accumulators for the kpl mid-channels fed by this input channel.
    accs = [None] * kpl
    for kd in range(k):
        slab = x_ref[kd:kd + Do, :]                         # (Do, LP) sublane slice
        # kw lane shifts shared by every (j, kh): k-1 rotations (kw=0 is free).
        kw_sh = [_lane_lshift(slab, kw, LP) for kw in range(k)]
        for j in range(kpl):
            cm = c * kpl + j
            for kh in range(k):
                t0 = (kd * k + kh) * k
                s = kw_sh[0] * dww_ref[cm, t0]
                for kw in range(1, k):
                    s = s + kw_sh[kw] * dww_ref[cm, t0 + kw]
                s = _lane_lshift(s, kh * Wp, LP)            # one rotation per (j, kh)
                accs[j] = s if accs[j] is None else accs[j] + s

    # Fused 1x1x1 pointwise: scalar-broadcast MAC into the resident output block.
    for j in range(kpl):
        cm = c * kpl + j
        for o in range(cout):
            out_ref[o] = out_ref[o] + pw_ref[o, cm] * accs[j]


def depthwise_separable_conv3d(x, dw_w, dw_b, pw_w, pw_b, *, kernel_size, padding):
    """x: (N, C, D, H, W); mirrors DepthwiseSeparableConv3d.forward (NCDHW)."""
    N, C, D, H, W = x.shape
    k, p = kernel_size, padding
    cmid = dw_w.shape[0]              # C * kernels_per_layer
    kpl = cmid // C
    cout = pw_w.shape[0]
    Dp, Hp, Wp = D + 2 * p, H + 2 * p, W + 2 * p
    Do, Ho, Wo = Dp - k + 1, Hp - k + 1, Wp - k + 1
    HpWp = Hp * Wp
    LP = pl.cdiv(HpWp, 128) * 128     # lane-dense plane width

    # Layout glue: spatial zero-pad, flatten (Hp, Wp) onto lanes, pad lanes to LP.
    xp = jnp.pad(x.astype(jnp.float32), ((0, 0), (0, 0), (p, p), (p, p), (p, p)))
    xp = xp.reshape(N, C, Dp, HpWp)
    if LP != HpWp:
        xp = jnp.pad(xp, ((0, 0), (0, 0), (0, 0), (0, LP - HpWp)))

    dww = dw_w.reshape(cmid, k * k * k).astype(jnp.float32)
    pw_mat = pw_w.reshape(cout, cmid).astype(jnp.float32)
    # Depthwise bias folds into the pointwise bias exactly (linearity).
    bias = pw_b.astype(jnp.float32) + pw_mat @ dw_b.astype(jnp.float32)   # (cout,)

    kernel = functools.partial(_dsconv3d_kernel, k=k, kpl=kpl, cout=cout,
                               Do=Do, Wp=Wp, LP=LP)

    flops = 2 * N * Do * Ho * Wo * (cmid * k ** 3 + cout * cmid)
    bytes_accessed = (xp.size + N * cout * Do * LP
                      + dww.size + pw_mat.size + bias.size) * 4

    out_full = pl.pallas_call(
        kernel,
        out_shape=jax.ShapeDtypeStruct((N, cout, Do, LP), jnp.float32),
        grid=(N, C),      # batch parallel, channel accumulation (>=4 steps per TC)
        in_specs=[
            pl.BlockSpec((None, None, Dp, LP), lambda n, c: (n, c, 0, 0)),
            pl.BlockSpec(memory_space=pltpu.MemorySpace.SMEM),   # depthwise taps
            pl.BlockSpec(memory_space=pltpu.MemorySpace.SMEM),   # pointwise weights
            pl.BlockSpec(memory_space=pltpu.MemorySpace.SMEM),   # folded bias
        ],
        out_specs=pl.BlockSpec((None, cout, Do, LP), lambda n, c: (n, 0, 0, 0)),
        compiler_params=pltpu.CompilerParams(
            dimension_semantics=("parallel", "arbitrary")),
        cost_estimate=pl.CostEstimate(flops=flops, transcendentals=0,
                                      bytes_accessed=bytes_accessed),
    )(xp, dww, pw_mat, bias)

    # Compact the lane-padded output back to (N, cout, Do, Ho, Wo) — pure layout glue.
    out = out_full[..., :HpWp].reshape(N, cout, Do, Hp, Wp)[:, :, :, :Ho, :Wo]
    return out.astype(x.dtype)


if __name__ == "__main__":
    # Module config: nin=4, nout=8, kernel_size=3, padding=1, kernels_per_layer=1
    N, nin, nout = 2, 4, 8
    k, pad, kpl = 3, 1, 1
    D = H = W = 8

    key = jax.random.PRNGKey(0)
    k1, k2, k3, k4, k5 = jax.random.split(key, 5)
    x    = jax.random.normal(k1, (N, nin, D, H, W), jnp.float32)
    dw_w = jax.random.normal(k2, (nin * kpl, 1, k, k, k), jnp.float32) * 0.1
    dw_b = jax.random.normal(k3, (nin * kpl,), jnp.float32) * 0.1
    pw_w = jax.random.normal(k4, (nout, nin * kpl, 1, 1, 1), jnp.float32) * 0.1
    pw_b = jax.random.normal(k5, (nout,), jnp.float32) * 0.1

    out = depthwise_separable_conv3d(x, dw_w, dw_b, pw_w, pw_b,
                                     kernel_size=k, padding=pad)
    out = jax.block_until_ready(out)

    # Pure-JAX reference (same semantics as the PyTorch module).
    dn = ('NCDHW', 'OIDHW', 'NCDHW')
    ref = lax.conv_general_dilated(x, dw_w, (1, 1, 1), [(pad, pad)] * 3,
                                   dimension_numbers=dn, feature_group_count=nin)
    ref = ref + dw_b[None, :, None, None, None]
    ref = lax.conv_general_dilated(ref, pw_w, (1, 1, 1), [(0, 0)] * 3,
                                   dimension_numbers=dn)
    ref = ref + pw_b[None, :, None, None, None]

    assert out.shape == ref.shape, (out.shape, ref.shape)
    err = float(jnp.max(jnp.abs(out - ref)))
    assert err < 1e-3, err
    print("KERNEL_OK")
</pallas_src>

<mosaic_0001>
module attributes {stable_mosaic.version = 11 : i64} {
  func.func @_dsconv3d_kernel(%arg0: i32, %arg1: i32, %arg2: memref<1x1x10x128xf32, #tpu.memory_space<vmem>>, %arg3: memref<4x27xf32, #tpu.memory_space<smem>>, %arg4: memref<8x4xf32, #tpu.memory_space<smem>>, %arg5: memref<8xf32, #tpu.memory_space<smem>>, %arg6: memref<1x8x8x128xf32, #tpu.memory_space<vmem>>) attributes {dimension_semantics = [#tpu.dimension_semantics<parallel>, #tpu.dimension_semantics<arbitrary>], iteration_bounds = array<i64: 2, 4>, scalar_prefetch = 0 : i64, scratch_operands = 0 : i64, tpu.core_type = #tpu.core_type<tc>, window_params = [{transform_indices = @transform_0, window_bounds = array<i64: 1, 1, 10, 128>}, {transform_indices = @transform_1, window_bounds = array<i64: 4, 27>}, {transform_indices = @transform_2, window_bounds = array<i64: 8, 4>}, {transform_indices = @transform_3, window_bounds = array<i64: 8>}, {transform_indices = @transform_4, window_bounds = array<i64: 1, 8, 8, 128>}]} {
    %c0_i32 = arith.constant 0 : i32
    %0 = arith.cmpi eq, %arg1, %c0_i32 : i32
    %1 = arith.extui %0 : i1 to i32
    %c0_i32_0 = arith.constant 0 : i32
    %2 = arith.cmpi ne, %1, %c0_i32_0 : i32
    scf.if %2 {
      %c0_100 = arith.constant 0 : index
      %243 = memref.load %arg5[%c0_100] : memref<8xf32, #tpu.memory_space<smem>>
      %244 = vector.broadcast %243 : f32 to vector<8x128xf32>
      %c0_101 = arith.constant 0 : index
      %c0_102 = arith.constant 0 : index
      %c0_103 = arith.constant 0 : index
      %c0_104 = arith.constant 0 : index
      %245 = vector.load %arg6[%c0_101, %c0_102, %c0_103, %c0_104] : memref<1x8x8x128xf32, #tpu.memory_space<vmem>>, vector<1x1x8x128xf32>
      %246 = vector.shape_cast %245 : vector<1x1x8x128xf32> to vector<8x128xf32>
      %247 = vector.shape_cast %244 : vector<8x128xf32> to vector<1x1x8x128xf32>
      tpu.vector_store %arg6[%c0_101, %c0_102, %c0_103, %c0_104], %247 {strides = array<i32>} : memref<1x8x8x128xf32, #tpu.memory_space<vmem>>, vector<1x1x8x128xf32>,
      %c1_105 = arith.constant 1 : index
      %248 = memref.load %arg5[%c1_105] : memref<8xf32, #tpu.memory_space<smem>>
      %249 = vector.broadcast %248 : f32 to vector<8x128xf32>
      %c0_106 = arith.constant 0 : index
      %c1_107 = arith.constant 1 : index
      %c0_108 = arith.constant 0 : index
      %c0_109 = arith.constant 0 : index
      %250 = vector.load %arg6[%c0_106, %c1_107, %c0_108, %c0_109] : memref<1x8x8x128xf32, #tpu.memory_space<vmem>>, vector<1x1x8x128xf32>
      %251 = vector.shape_cast %250 : vector<1x1x8x128xf32> to vector<8x128xf32>
      %252 = vector.shape_cast %249 : vector<8x128xf32> to vector<1x1x8x128xf32>
      tpu.vector_store %arg6[%c0_106, %c1_107, %c0_108, %c0_109], %252 {strides = array<i32>} : memref<1x8x8x128xf32, #tpu.memory_space<vmem>>, vector<1x1x8x128xf32>,
      %c2_110 = arith.constant 2 : index
      %253 = memref.load %arg5[%c2_110] : memref<8xf32, #tpu.memory_space<smem>>
      %254 = vector.broadcast %253 : f32 to vector<8x128xf32>
      %c0_111 = arith.constant 0 : index
      %c2_112 = arith.constant 2 : index
      %c0_113 = arith.constant 0 : index
      %c0_114 = arith.constant 0 : index
      %255 = vector.load %arg6[%c0_111, %c2_112, %c0_113, %c0_114] : memref<1x8x8x128xf32, #tpu.memory_space<vmem>>, vector<1x1x8x128xf32>
      %256 = vector.shape_cast %255 : vector<1x1x8x128xf32> to vector<8x128xf32>
      %257 = vector.shape_cast %254 : vector<8x128xf32> to vector<1x1x8x128xf32>
      tpu.vector_store %arg6[%c0_111, %c2_112, %c0_113, %c0_114], %257 {strides = array<i32>} : memref<1x8x8x128xf32, #tpu.memory_space<vmem>>, vector<1x1x8x128xf32>,
      %c3_115 = arith.constant 3 : index
      %258 = memref.load %arg5[%c3_115] : memref<8xf32, #tpu.memory_space<smem>>
      %259 = vector.broadcast %258 : f32 to vector<8x128xf32>
      %c0_116 = arith.constant 0 : index
      %c3_117 = arith.constant 3 : index
      %c0_118 = arith.constant 0 : index
      %c0_119 = arith.constant 0 : index
      %260 = vector.load %arg6[%c0_116, %c3_117, %c0_118, %c0_119] : memref<1x8x8x128xf32, #tpu.memory_space<vmem>>, vector<1x1x8x128xf32>
      %261 = vector.shape_cast %260 : vector<1x1x8x128xf32> to vector<8x128xf32>
      %262 = vector.shape_cast %259 : vector<8x128xf32> to vector<1x1x8x128xf32>
      tpu.vector_store %arg6[%c0_116, %c3_117, %c0_118, %c0_119], %262 {strides = array<i32>} : memref<1x8x8x128xf32, #tpu.memory_space<vmem>>, vector<1x1x8x128xf32>,
      %c4_120 = arith.constant 4 : index
      %263 = memref.load %arg5[%c4_120] : memref<8xf32, #tpu.memory_space<smem>>
      %264 = vector.broadcast %263 : f32 to vector<8x128xf32>
      %c0_121 = arith.constant 0 : index
      %c4_122 = arith.constant 4 : index
      %c0_123 = arith.constant 0 : index
      %c0_124 = arith.constant 0 : index
      %265 = vector.load %arg6[%c0_121, %c4_122, %c0_123, %c0_124] : memref<1x8x8x128xf32, #tpu.memory_space<vmem>>, vector<1x1x8x128xf32>
      %266 = vector.shape_cast %265 : vector<1x1x8x128xf32> to vector<8x128xf32>
      %267 = vector.shape_cast %264 : vector<8x128xf32> to vector<1x1x8x128xf32>
      tpu.vector_store %arg6[%c0_121, %c4_122, %c0_123, %c0_124], %267 {strides = array<i32>} : memref<1x8x8x128xf32, #tpu.memory_space<vmem>>, vector<1x1x8x128xf32>,
      %c5_125 = arith.constant 5 : index
      %268 = memref.load %arg5[%c5_125] : memref<8xf32, #tpu.memory_space<smem>>
      %269 = vector.broadcast %268 : f32 to vector<8x128xf32>
      %c0_126 = arith.constant 0 : index
      %c5_127 = arith.constant 5 : index
      %c0_128 = arith.constant 0 : index
      %c0_129 = arith.constant 0 : index
      %270 = vector.load %arg6[%c0_126, %c5_127, %c0_128, %c0_129] : memref<1x8x8x128xf32, #tpu.memory_space<vmem>>, vector<1x1x8x128xf32>
      %271 = vector.shape_cast %270 : vector<1x1x8x128xf32> to vector<8x128xf32>
      %272 = vector.shape_cast %269 : vector<8x128xf32> to vector<1x1x8x128xf32>
      tpu.vector_store %arg6[%c0_126, %c5_127, %c0_128, %c0_129], %272 {strides = array<i32>} : memref<1x8x8x128xf32, #tpu.memory_space<vmem>>, vector<1x1x8x128xf32>,
      %c6_130 = arith.constant 6 : index
      %273 = memref.load %arg5[%c6_130] : memref<8xf32, #tpu.memory_space<smem>>
      %274 = vector.broadcast %273 : f32 to vector<8x128xf32>
      %c0_131 = arith.constant 0 : index
      %c6_132 = arith.constant 6 : index
      %c0_133 = arith.constant 0 : index
      %c0_134 = arith.constant 0 : index
      %275 = vector.load %arg6[%c0_131, %c6_132, %c0_133, %c0_134] : memref<1x8x8x128xf32, #tpu.memory_space<vmem>>, vector<1x1x8x128xf32>
      %276 = vector.shape_cast %275 : vector<1x1x8x128xf32> to vector<8x128xf32>
      %277 = vector.shape_cast %274 : vector<8x128xf32> to vector<1x1x8x128xf32>
      tpu.vector_store %arg6[%c0_131, %c6_132, %c0_133, %c0_134], %277 {strides = array<i32>} : memref<1x8x8x128xf32, #tpu.memory_space<vmem>>, vector<1x1x8x128xf32>,
      %c7_135 = arith.constant 7 : index
      %278 = memref.load %arg5[%c7_135] : memref<8xf32, #tpu.memory_space<smem>>
      %279 = vector.broadcast %278 : f32 to vector<8x128xf32>
      %c0_136 = arith.constant 0 : index
      %c7_137 = arith.constant 7 : index
      %c0_138 = arith.constant 0 : index
      %c0_139 = arith.constant 0 : index
      %280 = vector.load %arg6[%c0_136, %c7_137, %c0_138, %c0_139] : memref<1x8x8x128xf32, #tpu.memory_space<vmem>>, vector<1x1x8x128xf32>
      %281 = vector.shape_cast %280 : vector<1x1x8x128xf32> to vector<8x128xf32>
      %282 = vector.shape_cast %279 : vector<8x128xf32> to vector<1x1x8x128xf32>
      tpu.vector_store %arg6[%c0_136, %c7_137, %c0_138, %c0_139], %282 {strides = array<i32>} : memref<1x8x8x128xf32, #tpu.memory_space<vmem>>, vector<1x1x8x128xf32>,
    } else {
    }
    %c0 = arith.constant 0 : index
    %c0_1 = arith.constant 0 : index
    %c0_2 = arith.constant 0 : index
    %c0_3 = arith.constant 0 : index
    %3 = vector.load %arg2[%c0, %c0_1, %c0_2, %c0_3] : memref<1x1x10x128xf32, #tpu.memory_space<vmem>>, vector<1x1x8x128xf32>
    %4 = vector.shape_cast %3 : vector<1x1x8x128xf32> to vector<8x128xf32>
    %c127_i32 = arith.constant 127 : i32
    %5 = tpu.dynamic_rotate %4 by %c127_i32 dim 1 : vector<8x128xf32>, i32 -> vector<8x128xf32>
    %c126_i32 = arith.constant 126 : i32
    %6 = tpu.dynamic_rotate %4 by %c126_i32 dim 1 : vector<8x128xf32>, i32 -> vector<8x128xf32>
    %c1_i32 = arith.constant 1 : i32
    %7 = arith.muli %arg1, %c1_i32 : i32
    %c0_i32_4 = arith.constant 0 : i32
    %8 = arith.addi %7, %c0_i32_4 : i32
    %9 = arith.index_cast %8 : i32 to index
    %c0_5 = arith.constant 0 : index
    %10 = memref.load %arg3[%9, %c0_5] : memref<4x27xf32, #tpu.memory_space<smem>>
    %11 = vector.broadcast %10 : f32 to vector<8x128xf32>
    %12 = arith.mulf %4, %11 : vector<8x128xf32>
    %13 = arith.index_cast %8 : i32 to index
    %c1 = arith.constant 1 : index
    %14 = memref.load %arg3[%13, %c1] : memref<4x27xf32, #tpu.memory_space<smem>>
    %15 = vector.broadcast %14 : f32 to vector<8x128xf32>
    %16 = arith.mulf %5, %15 : vector<8x128xf32>
    %17 = arith.addf %12, %16 : vector<8x128xf32>
    %18 = arith.index_cast %8 : i32 to index
    %c2 = arith.constant 2 : index
    %19 = memref.load %arg3[%18, %c2] : memref<4x27xf32, #tpu.memory_space<smem>>
    %20 = vector.broadcast %19 : f32 to vector<8x128xf32>
    %21 = arith.mulf %6, %20 : vector<8x128xf32>
    %22 = arith.addf %17, %21 : vector<8x128xf32>
    %23 = arith.index_cast %8 : i32 to index
    %c3 = arith.constant 3 : index
    %24 = memref.load %arg3[%23, %c3] : memref<4x27xf32, #tpu.memory_space<smem>>
    %25 = vector.broadcast %24 : f32 to vector<8x128xf32>
    %26 = arith.mulf %4, %25 : vector<8x128xf32>
    %27 = arith.index_cast %8 : i32 to index
    %c4 = arith.constant 4 : index
    %28 = memref.load %arg3[%27, %c4] : memref<4x27xf32, #tpu.memory_space<smem>>
    %29 = vector.broadcast %28 : f32 to vector<8x128xf32>
    %30 = arith.mulf %5, %29 : vector<8x128xf32>
    %31 = arith.addf %26, %30 : vector<8x128xf32>
    %32 = arith.index_cast %8 : i32 to index
    %c5 = arith.constant 5 : index
    %33 = memref.load %arg3[%32, %c5] : memref<4x27xf32, #tpu.memory_space<smem>>
    %34 = vector.broadcast %33 : f32 to vector<8x128xf32>
    %35 = arith.mulf %6, %34 : vector<8x128xf32>
    %36 = arith.addf %31, %35 : vector<8x128xf32>
    %c118_i32 = arith.constant 118 : i32
    %37 = tpu.dynamic_rotate %36 by %c118_i32 dim 1 : vector<8x128xf32>, i32 -> vector<8x128xf32>
    %38 = arith.addf %22, %37 : vector<8x128xf32>
    %39 = arith.index_cast %8 : i32 to index
    %c6 = arith.constant 6 : index
    %40 = memref.load %arg3[%39, %c6] : memref<4x27xf32, #tpu.memory_space<smem>>
    %41 = vector.broadcast %40 : f32 to vector<8x128xf32>
    %42 = arith.mulf %4, %41 : vector<8x128xf32>
    %43 = arith.index_cast %8 : i32 to index
    %c7 = arith.constant 7 : index
    %44 = memref.load %arg3[%43, %c7] : memref<4x27xf32, #tpu.memory_space<smem>>
    %45 = vector.broadcast %44 : f32 to vector<8x128xf32>
    %46 = arith.mulf %5, %45 : vector<8x128xf32>
    %47 = arith.addf %42, %46 : vector<8x128xf32>
    %48 = arith.index_cast %8 : i32 to index
    %c8 = arith.constant 8 : index
    %49 = memref.load %arg3[%48, %c8] : memref<4x27xf32, #tpu.memory_space<smem>>
    %50 = vector.broadcast %49 : f32 to vector<8x128xf32>
    %51 = arith.mulf %6, %50 : vector<8x128xf32>
    %52 = arith.addf %47, %51 : vector<8x128xf32>
    %c108_i32 = arith.constant 108 : i32
    %53 = tpu.dynamic_rotate %52 by %c108_i32 dim 1 : vector<8x128xf32>, i32 -> vector<8x128xf32>
    %54 = arith.addf %38, %53 : vector<8x128xf32>
    %c0_6 = arith.constant 0 : index
    %c0_7 = arith.constant 0 : index
    %c1_8 = arith.constant 1 : index
    %c0_9 = arith.constant 0 : index
    %55 = vector.load %arg2[%c0_6, %c0_7, %c1_8, %c0_9] : memref<1x1x10x128xf32, #tpu.memory_space<vmem>>, vector<1x1x8x128xf32>
    %56 = vector.shape_cast %55 : vector<1x1x8x128xf32> to vector<8x128xf32>
    %c127_i32_10 = arith.constant 127 : i32
    %57 = tpu.dynamic_rotate %56 by %c127_i32_10 dim 1 : vector<8x128xf32>, i32 -> vector<8x128xf32>
    %c126_i32_11 = arith.constant 126 : i32
    %58 = tpu.dynamic_rotate %56 by %c126_i32_11 dim 1 : vector<8x128xf32>, i32 -> vector<8x128xf32>
    %c1_i32_12 = arith.constant 1 : i32
    %59 = arith.muli %arg1, %c1_i32_12 : i32
    %c0_i32_13 = arith.constant 0 : i32
    %60 = arith.addi %59, %c0_i32_13 : i32
    %61 = arith.index_cast %60 : i32 to index
    %c9 = arith.constant 9 : index
    %62 = memref.load %arg3[%61, %c9] : memref<4x27xf32, #tpu.memory_space<smem>>
    %63 = vector.broadcast %62 : f32 to vector<8x128xf32>
    %64 = arith.mulf %56, %63 : vector<8x128xf32>
    %65 = arith.index_cast %60 : i32 to index
    %c10 = arith.constant 10 : index
    %66 = memref.load %arg3[%65, %c10] : memref<4x27xf32, #tpu.memory_space<smem>>
    %67 = vector.broadcast %66 : f32 to vector<8x128xf32>
    %68 = arith.mulf %57, %67 : vector<8x128xf32>
    %69 = arith.addf %64, %68 : vector<8x128xf32>
    %70 = arith.index_cast %60 : i32 to index
    %c11 = arith.constant 11 : index
    %71 = memref.load %arg3[%70, %c11] : memref<4x27xf32, #tpu.memory_space<smem>>
    %72 = vector.broadcast %71 : f32 to vector<8x128xf32>
    %73 = arith.mulf %58, %72 : vector<8x128xf32>
    %74 = arith.addf %69, %73 : vector<8x128xf32>
    %75 = arith.addf %54, %74 : vector<8x128xf32>
    %76 = arith.index_cast %60 : i32 to index
    %c12 = arith.constant 12 : index
    %77 = memref.load %arg3[%76, %c12] : memref<4x27xf32, #tpu.memory_space<smem>>
    %78 = vector.broadcast %77 : f32 to vector<8x128xf32>
    %79 = arith.mulf %56, %78 : vector<8x128xf32>
    %80 = arith.index_cast %60 : i32 to index
    %c13 = arith.constant 13 : index
    %81 = memref.load %arg3[%80, %c13] : memref<4x27xf32, #tpu.memory_space<smem>>
    %82 = vector.broadcast %81 : f32 to vector<8x128xf32>
    %83 = arith.mulf %57, %82 : vector<8x128xf32>
    %84 = arith.addf %79, %83 : vector<8x128xf32>
    %85 = arith.index_cast %60 : i32 to index
    %c14 = arith.constant 14 : index
    %86 = memref.load %arg3[%85, %c14] : memref<4x27xf32, #tpu.memory_space<smem>>
    %87 = vector.broadcast %86 : f32 to vector<8x128xf32>
    %88 = arith.mulf %58, %87 : vector<8x128xf32>
    %89 = arith.addf %84, %88 : vector<8x128xf32>
    %c118_i32_14 = arith.constant 118 : i32
    %90 = tpu.dynamic_rotate %89 by %c118_i32_14 dim 1 : vector<8x128xf32>, i32 -> vector<8x128xf32>
    %91 = arith.addf %75, %90 : vector<8x128xf32>
    %92 = arith.index_cast %60 : i32 to index
    %c15 = arith.constant 15 : index
    %93 = memref.load %arg3[%92, %c15] : memref<4x27xf32, #tpu.memory_space<smem>>
    %94 = vector.broadcast %93 : f32 to vector<8x128xf32>
    %95 = arith.mulf %56, %94 : vector<8x128xf32>
    %96 = arith.index_cast %60 : i32 to index
    %c16 = arith.constant 16 : index
    %97 = memref.load %arg3[%96, %c16] : memref<4x27xf32, #tpu.memory_space<smem>>
    %98 = vector.broadcast %97 : f32 to vector<8x128xf32>
    %99 = arith.mulf %57, %98 : vector<8x128xf32>
    %100 = arith.addf %95, %99 : vector<8x128xf32>
    %101 = arith.index_cast %60 : i32 to index
    %c17 = arith.constant 17 : index
    %102 = memref.load %arg3[%101, %c17] : memref<4x27xf32, #tpu.memory_space<smem>>
    %103 = vector.broadcast %102 : f32 to vector<8x128xf32>
    %104 = arith.mulf %58, %103 : vector<8x128xf32>
    %105 = arith.addf %100, %104 : vector<8x128xf32>
    %c108_i32_15 = arith.constant 108 : i32
    %106 = tpu.dynamic_rotate %105 by %c108_i32_15 dim 1 : vector<8x128xf32>, i32 -> vector<8x128xf32>
    %107 = arith.addf %91, %106 : vector<8x128xf32>
    %c0_16 = arith.constant 0 : index
    %c0_17 = arith.constant 0 : index
    %c2_18 = arith.constant 2 : index
    %c0_19 = arith.constant 0 : index
    %108 = vector.load %arg2[%c0_16, %c0_17, %c2_18, %c0_19] : memref<1x1x10x128xf32, #tpu.memory_space<vmem>>, vector<1x1x8x128xf32>
    %109 = vector.shape_cast %108 : vector<1x1x8x128xf32> to vector<8x128xf32>
    %c127_i32_20 = arith.constant 127 : i32
    %110 = tpu.dynamic_rotate %109 by %c127_i32_20 dim 1 : vector<8x128xf32>, i32 -> vector<8x128xf32>
    %c126_i32_21 = arith.constant 126 : i32
    %111 = tpu.dynamic_rotate %109 by %c126_i32_21 dim 1 : vector<8x128xf32>, i32 -> vector<8x128xf32>
    %c1_i32_22 = arith.constant 1 : i32
    %112 = arith.muli %arg1, %c1_i32_22 : i32
    %c0_i32_23 = arith.constant 0 : i32
    %113 = arith.addi %112, %c0_i32_23 : i32
    %114 = arith.index_cast %113 : i32 to index
    %c18 = arith.constant 18 : index
    %115 = memref.load %arg3[%114, %c18] : memref<4x27xf32, #tpu.memory_space<smem>>
    %116 = vector.broadcast %115 : f32 to vector<8x128xf32>
    %117 = arith.mulf %109, %116 : vector<8x128xf32>
    %118 = arith.index_cast %113 : i32 to index
    %c19 = arith.constant 19 : index
    %119 = memref.load %arg3[%118, %c19] : memref<4x27xf32, #tpu.memory_space<smem>>
    %120 = vector.broadcast %119 : f32 to vector<8x128xf32>
    %121 = arith.mulf %110, %120 : vector<8x128xf32>
    %122 = arith.addf %117, %121 : vector<8x128xf32>
    %123 = arith.index_cast %113 : i32 to index
    %c20 = arith.constant 20 : index
    %124 = memref.load %arg3[%123, %c20] : memref<4x27xf32, #tpu.memory_space<smem>>
    %125 = vector.broadcast %124 : f32 to vector<8x128xf32>
    %126 = arith.mulf %111, %125 : vector<8x128xf32>
    %127 = arith.addf %122, %126 : vector<8x128xf32>
    %128 = arith.addf %107, %127 : vector<8x128xf32>
    %129 = arith.index_cast %113 : i32 to index
    %c21 = arith.constant 21 : index
    %130 = memref.load %arg3[%129, %c21] : memref<4x27xf32, #tpu.memory_space<smem>>
    %131 = vector.broadcast %130 : f32 to vector<8x128xf32>
    %132 = arith.mulf %109, %131 : vector<8x128xf32>
    %133 = arith.index_cast %113 : i32 to index
    %c22 = arith.constant 22 : index
    %134 = memref.load %arg3[%133, %c22] : memref<4x27xf32, #tpu.memory_space<smem>>
    %135 = vector.broadcast %134 : f32 to vector<8x128xf32>
    %136 = arith.mulf %110, %135 : vector<8x128xf32>
    %137 = arith.addf %132, %136 : vector<8x128xf32>
    %138 = arith.index_cast %113 : i32 to index
    %c23 = arith.constant 23 : index
    %139 = memref.load %arg3[%138, %c23] : memref<4x27xf32, #tpu.memory_space<smem>>
    %140 = vector.broadcast %139 : f32 to vector<8x128xf32>
    %141 = arith.mulf %111, %140 : vector<8x128xf32>
    %142 = arith.addf %137, %141 : vector<8x128xf32>
    %c118_i32_24 = arith.constant 118 : i32
    %143 = tpu.dynamic_rotate %142 by %c118_i32_24 dim 1 : vector<8x128xf32>, i32 -> vector<8x128xf32>
    %144 = arith.addf %128, %143 : vector<8x128xf32>
    %145 = arith.index_cast %113 : i32 to index
    %c24 = arith.constant 24 : index
    %146 = memref.load %arg3[%145, %c24] : memref<4x27xf32, #tpu.memory_space<smem>>
    %147 = vector.broadcast %146 : f32 to vector<8x128xf32>
    %148 = arith.mulf %109, %147 : vector<8x128xf32>
    %149 = arith.index_cast %113 : i32 to index
    %c25 = arith.constant 25 : index
    %150 = memref.load %arg3[%149, %c25] : memref<4x27xf32, #tpu.memory_space<smem>>
    %151 = vector.broadcast %150 : f32 to vector<8x128xf32>
    %152 = arith.mulf %110, %151 : vector<8x128xf32>
    %153 = arith.addf %148, %152 : vector<8x128xf32>
    %154 = arith.index_cast %113 : i32 to index
    %c26 = arith.constant 26 : index
    %155 = memref.load %arg3[%154, %c26] : memref<4x27xf32, #tpu.memory_space<smem>>
    %156 = vector.broadcast %155 : f32 to vector<8x128xf32>
    %157 = arith.mulf %111, %156 : vector<8x128xf32>
    %158 = arith.addf %153, %157 : vector<8x128xf32>
    %c108_i32_25 = arith.constant 108 : i32
    %159 = tpu.dynamic_rotate %158 by %c108_i32_25 dim 1 : vector<8x128xf32>, i32 -> vector<8x128xf32>
    %160 = arith.addf %144, %159 : vector<8x128xf32>
    %c1_i32_26 = arith.constant 1 : i32
    %161 = arith.muli %arg1, %c1_i32_26 : i32
    %c0_i32_27 = arith.constant 0 : i32
    %162 = arith.addi %161, %c0_i32_27 : i32
    %c0_28 = arith.constant 0 : index
    %c0_29 = arith.constant 0 : index
    %c0_30 = arith.constant 0 : index
    %c0_31 = arith.constant 0 : index
    %163 = vector.load %arg6[%c0_28, %c0_29, %c0_30, %c0_31] : memref<1x8x8x128xf32, #tpu.memory_space<vmem>>, vector<1x1x8x128xf32>
    %164 = vector.shape_cast %163 : vector<1x1x8x128xf32> to vector<8x128xf32>
    %c0_32 = arith.constant 0 : index
    %165 = arith.index_cast %162 : i32 to index
    %166 = memref.load %arg4[%c0_32, %165] : memref<8x4xf32, #tpu.memory_space<smem>>
    %167 = vector.broadcast %166 : f32 to vector<8x128xf32>
    %168 = arith.mulf %167, %160 : vector<8x128xf32>
    %169 = arith.addf %164, %168 : vector<8x128xf32>
    %c0_33 = arith.constant 0 : index
    %c0_34 = arith.constant 0 : index
    %c0_35 = arith.constant 0 : index
    %c0_36 = arith.constant 0 : index
    %170 = vector.load %arg6[%c0_33, %c0_34, %c0_35, %c0_36] : memref<1x8x8x128xf32, #tpu.memory_space<vmem>>, vector<1x1x8x128xf32>
    %171 = vector.shape_cast %170 : vector<1x1x8x128xf32> to vector<8x128xf32>
    %172 = vector.shape_cast %169 : vector<8x128xf32> to vector<1x1x8x128xf32>
    tpu.vector_store %arg6[%c0_33, %c0_34, %c0_35, %c0_36], %172 {strides = array<i32>} : memref<1x8x8x128xf32, #tpu.memory_space<vmem>>, vector<1x1x8x128xf32>,
    %c0_37 = arith.constant 0 : index
    %c1_38 = arith.constant 1 : index
    %c0_39 = arith.constant 0 : index
    %c0_40 = arith.constant 0 : index
    %173 = vector.load %arg6[%c0_37, %c1_38, %c0_39, %c0_40] : memref<1x8x8x128xf32, #tpu.memory_space<vmem>>, vector<1x1x8x128xf32>
    %174 = vector.shape_cast %173 : vector<1x1x8x128xf32> to vector<8x128xf32>
    %c1_41 = arith.constant 1 : index
    %175 = arith.index_cast %162 : i32 to index
    %176 = memref.load %arg4[%c1_41, %175] : memref<8x4xf32, #tpu.memory_space<smem>>
    %177 = vector.broadcast %176 : f32 to vector<8x128xf32>
    %178 = arith.mulf %177, %160 : vector<8x128xf32>
    %179 = arith.addf %174, %178 : vector<8x128xf32>
    %c0_42 = arith.constant 0 : index
    %c1_43 = arith.constant 1 : index
    %c0_44 = arith.constant 0 : index
    %c0_45 = arith.constant 0 : index
    %180 = vector.load %arg6[%c0_42, %c1_43, %c0_44, %c0_45] : memref<1x8x8x128xf32, #tpu.memory_space<vmem>>, vector<1x1x8x128xf32>
    %181 = vector.shape_cast %180 : vector<1x1x8x128xf32> to vector<8x128xf32>
    %182 = vector.shape_cast %179 : vector<8x128xf32> to vector<1x1x8x128xf32>
    tpu.vector_store %arg6[%c0_42, %c1_43, %c0_44, %c0_45], %182 {strides = array<i32>} : memref<1x8x8x128xf32, #tpu.memory_space<vmem>>, vector<1x1x8x128xf32>,
    %c0_46 = arith.constant 0 : index
    %c2_47 = arith.constant 2 : index
    %c0_48 = arith.constant 0 : index
    %c0_49 = arith.constant 0 : index
    %183 = vector.load %arg6[%c0_46, %c2_47, %c0_48, %c0_49] : memref<1x8x8x128xf32, #tpu.memory_space<vmem>>, vector<1x1x8x128xf32>
    %184 = vector.shape_cast %183 : vector<1x1x8x128xf32> to vector<8x128xf32>
    %c2_50 = arith.constant 2 : index
    %185 = arith.index_cast %162 : i32 to index
    %186 = memref.load %arg4[%c2_50, %185] : memref<8x4xf32, #tpu.memory_space<smem>>
    %187 = vector.broadcast %186 : f32 to vector<8x128xf32>
    %188 = arith.mulf %187, %160 : vector<8x128xf32>
    %189 = arith.addf %184, %188 : vector<8x128xf32>
    %c0_51 = arith.constant 0 : index
    %c2_52 = arith.constant 2 : index
    %c0_53 = arith.constant 0 : index
    %c0_54 = arith.constant 0 : index
    %190 = vector.load %arg6[%c0_51, %c2_52, %c0_53, %c0_54] : memref<1x8x8x128xf32, #tpu.memory_space<vmem>>, vector<1x1x8x128xf32>
    %191 = vector.shape_cast %190 : vector<1x1x8x128xf32> to vector<8x128xf32>
    %192 = vector.shape_cast %189 : vector<8x128xf32> to vector<1x1x8x128xf32>
    tpu.vector_store %arg6[%c0_51, %c2_52, %c0_53, %c0_54], %192 {strides = array<i32>} : memref<1x8x8x128xf32, #tpu.memory_space<vmem>>, vector<1x1x8x128xf32>,
    %c0_55 = arith.constant 0 : index
    %c3_56 = arith.constant 3 : index
    %c0_57 = arith.constant 0 : index
    %c0_58 = arith.constant 0 : index
    %193 = vector.load %arg6[%c0_55, %c3_56, %c0_57, %c0_58] : memref<1x8x8x128xf32, #tpu.memory_space<vmem>>, vector<1x1x8x128xf32>
    %194 = vector.shape_cast %193 : vector<1x1x8x128xf32> to vector<8x128xf32>
    %c3_59 = arith.constant 3 : index
    %195 = arith.index_cast %162 : i32 to index
    %196 = memref.load %arg4[%c3_59, %195] : memref<8x4xf32, #tpu.memory_space<smem>>
    %197 = vector.broadcast %196 : f32 to vector<8x128xf32>
    %198 = arith.mulf %197, %160 : vector<8x128xf32>
    %199 = arith.addf %194, %198 : vector<8x128xf32>
    %c0_60 = arith.constant 0 : index
    %c3_61 = arith.constant 3 : index
    %c0_62 = arith.constant 0 : index
    %c0_63 = arith.constant 0 : index
    %200 = vector.load %arg6[%c0_60, %c3_61, %c0_62, %c0_63] : memref<1x8x8x128xf32, #tpu.memory_space<vmem>>, vector<1x1x8x128xf32>
    %201 = vector.shape_cast %200 : vector<1x1x8x128xf32> to vector<8x128xf32>
    %202 = vector.shape_cast %199 : vector<8x128xf32> to vector<1x1x8x128xf32>
    tpu.vector_store %arg6[%c0_60, %c3_61, %c0_62, %c0_63], %202 {strides = array<i32>} : memref<1x8x8x128xf32, #tpu.memory_space<vmem>>, vector<1x1x8x128xf32>,
    %c0_64 = arith.constant 0 : index
    %c4_65 = arith.constant 4 : index
    %c0_66 = arith.constant 0 : index
    %c0_67 = arith.constant 0 : index
    %203 = vector.load %arg6[%c0_64, %c4_65, %c0_66, %c0_67] : memref<1x8x8x128xf32, #tpu.memory_space<vmem>>, vector<1x1x8x128xf32>
    %204 = vector.shape_cast %203 : vector<1x1x8x128xf32> to vector<8x128xf32>
    %c4_68 = arith.constant 4 : index
    %205 = arith.index_cast %162 : i32 to index
    %206 = memref.load %arg4[%c4_68, %205] : memref<8x4xf32, #tpu.memory_space<smem>>
    %207 = vector.broadcast %206 : f32 to vector<8x128xf32>
    %208 = arith.mulf %207, %160 : vector<8x128xf32>
    %209 = arith.addf %204, %208 : vector<8x128xf32>
    %c0_69 = arith.constant 0 : index
    %c4_70 = arith.constant 4 : index
    %c0_71 = arith.constant 0 : index
    %c0_72 = arith.constant 0 : index
    %210 = vector.load %arg6[%c0_69, %c4_70, %c0_71, %c0_72] : memref<1x8x8x128xf32, #tpu.memory_space<vmem>>, vector<1x1x8x128xf32>
    %211 = vector.shape_cast %210 : vector<1x1x8x128xf32> to vector<8x128xf32>
    %212 = vector.shape_cast %209 : vector<8x128xf32> to vector<1x1x8x128xf32>
    tpu.vector_store %arg6[%c0_69, %c4_70, %c0_71, %c0_72], %212 {strides = array<i32>} : memref<1x8x8x128xf32, #tpu.memory_space<vmem>>, vector<1x1x8x128xf32>,
    %c0_73 = arith.constant 0 : index
    %c5_74 = arith.constant 5 : index
    %c0_75 = arith.constant 0 : index
    %c0_76 = arith.constant 0 : index
    %213 = vector.load %arg6[%c0_73, %c5_74, %c0_75, %c0_76] : memref<1x8x8x128xf32, #tpu.memory_space<vmem>>, vector<1x1x8x128xf32>
    %214 = vector.shape_cast %213 : vector<1x1x8x128xf32> to vector<8x128xf32>
    %c5_77 = arith.constant 5 : index
    %215 = arith.index_cast %162 : i32 to index
    %216 = memref.load %arg4[%c5_77, %215] : memref<8x4xf32, #tpu.memory_space<smem>>
    %217 = vector.broadcast %216 : f32 to vector<8x128xf32>
    %218 = arith.mulf %217, %160 : vector<8x128xf32>
    %219 = arith.addf %214, %218 : vector<8x128xf32>
    %c0_78 = arith.constant 0 : index
    %c5_79 = arith.constant 5 : index
    %c0_80 = arith.constant 0 : index
    %c0_81 = arith.constant 0 : index
    %220 = vector.load %arg6[%c0_78, %c5_79, %c0_80, %c0_81] : memref<1x8x8x128xf32, #tpu.memory_space<vmem>>, vector<1x1x8x128xf32>
    %221 = vector.shape_cast %220 : vector<1x1x8x128xf32> to vector<8x128xf32>
    %222 = vector.shape_cast %219 : vector<8x128xf32> to vector<1x1x8x128xf32>
    tpu.vector_store %arg6[%c0_78, %c5_79, %c0_80, %c0_81], %222 {strides = array<i32>} : memref<1x8x8x128xf32, #tpu.memory_space<vmem>>, vector<1x1x8x128xf32>,
    %c0_82 = arith.constant 0 : index
    %c6_83 = arith.constant 6 : index
    %c0_84 = arith.constant 0 : index
    %c0_85 = arith.constant 0 : index
    %223 = vector.load %arg6[%c0_82, %c6_83, %c0_84, %c0_85] : memref<1x8x8x128xf32, #tpu.memory_space<vmem>>, vector<1x1x8x128xf32>
    %224 = vector.shape_cast %223 : vector<1x1x8x128xf32> to vector<8x128xf32>
    %c6_86 = arith.constant 6 : index
    %225 = arith.index_cast %162 : i32 to index
    %226 = memref.load %arg4[%c6_86, %225] : memref<8x4xf32, #tpu.memory_space<smem>>
    %227 = vector.broadcast %226 : f32 to vector<8x128xf32>
    %228 = arith.mulf %227, %160 : vector<8x128xf32>
    %229 = arith.addf %224, %228 : vector<8x128xf32>
    %c0_87 = arith.constant 0 : index
    %c6_88 = arith.constant 6 : index
    %c0_89 = arith.constant 0 : index
    %c0_90 = arith.constant 0 : index
    %230 = vector.load %arg6[%c0_87, %c6_88, %c0_89, %c0_90] : memref<1x8x8x128xf32, #tpu.memory_space<vmem>>, vector<1x1x8x128xf32>
    %231 = vector.shape_cast %230 : vector<1x1x8x128xf32> to vector<8x128xf32>
    %232 = vector.shape_cast %229 : vector<8x128xf32> to vector<1x1x8x128xf32>
    tpu.vector_store %arg6[%c0_87, %c6_88, %c0_89, %c0_90], %232 {strides = array<i32>} : memref<1x8x8x128xf32, #tpu.memory_space<vmem>>, vector<1x1x8x128xf32>,
    %c0_91 = arith.constant 0 : index
    %c7_92 = arith.constant 7 : index
    %c0_93 = arith.constant 0 : index
    %c0_94 = arith.constant 0 : index
    %233 = vector.load %arg6[%c0_91, %c7_92, %c0_93, %c0_94] : memref<1x8x8x128xf32, #tpu.memory_space<vmem>>, vector<1x1x8x128xf32>
    %234 = vector.shape_cast %233 : vector<1x1x8x128xf32> to vector<8x128xf32>
    %c7_95 = arith.constant 7 : index
    %235 = arith.index_cast %162 : i32 to index
    %236 = memref.load %arg4[%c7_95, %235] : memref<8x4xf32, #tpu.memory_space<smem>>
    %237 = vector.broadcast %236 : f32 to vector<8x128xf32>
    %238 = arith.mulf %237, %160 : vector<8x128xf32>
    %239 = arith.addf %234, %238 : vector<8x128xf32>
    %c0_96 = arith.constant 0 : index
    %c7_97 = arith.constant 7 : index
    %c0_98 = arith.constant 0 : index
    %c0_99 = arith.constant 0 : index
    %240 = vector.load %arg6[%c0_96, %c7_97, %c0_98, %c0_99] : memref<1x8x8x128xf32, #tpu.memory_space<vmem>>, vector<1x1x8x128xf32>
    %241 = vector.shape_cast %240 : vector<1x1x8x128xf32> to vector<8x128xf32>
    %242 = vector.shape_cast %239 : vector<8x128xf32> to vector<1x1x8x128xf32>
    tpu.vector_store %arg6[%c0_96, %c7_97, %c0_98, %c0_99], %242 {strides = array<i32>} : memref<1x8x8x128xf32, #tpu.memory_space<vmem>>, vector<1x1x8x128xf32>,
    return
  }
  func.func @transform_0(%arg0: i32, %arg1: i32) -> (i32, i32, i32, i32) {
    %c0_i32 = arith.constant 0 : i32
    %c0_i32_0 = arith.constant 0 : i32
    %c0_i32_1 = arith.constant 0 : i32
    return %arg0, %arg1, %c0_i32, %c0_i32_0 : i32, i32, i32, i32
  }
  func.func @transform_1(%arg0: i32, %arg1: i32) -> (i32, i32) {
    %c0_i32 = arith.constant 0 : i32
    %c0_i32_0 = arith.constant 0 : i32
    %c0_i32_1 = arith.constant 0 : i32
    return %c0_i32, %c0_i32_0 : i32, i32
  }
  func.func @transform_2(%arg0: i32, %arg1: i32) -> (i32, i32) {
    %c0_i32 = arith.constant 0 : i32
    %c0_i32_0 = arith.constant 0 : i32
    %c0_i32_1 = arith.constant 0 : i32
    return %c0_i32, %c0_i32_0 : i32, i32
  }
  func.func @transform_3(%arg0: i32, %arg1: i32) -> i32 {
    %c0_i32 = arith.constant 0 : i32
    %c0_i32_0 = arith.constant 0 : i32
    return %c0_i32 : i32
  }
  func.func @transform_4(%arg0: i32, %arg1: i32) -> (i32, i32, i32, i32) {
    %c0_i32 = arith.constant 0 : i32
    %c0_i32_0 = arith.constant 0 : i32
    %c0_i32_1 = arith.constant 0 : i32
    %c0_i32_2 = arith.constant 0 : i32
    return %arg0, %c0_i32, %c0_i32_0, %c0_i32_1 : i32, i32, i32, i32
  }
}

</mosaic_0001>

<llo_original>
// kernel: tpu_custom_call.1
$region0: #{tpu_custom_call.1}
  #allocation0 [shape = 'u32[]', space=smem, size = 0x4, offset = 0x4, fixed_abs, tag = 'smem constant byte address 0x4 - core index']
  #allocation1 [shape = 'u32[144,128]{1,0:T(1,128)}', space=vmem, size = 0x12000, scoped, tag = 'internal scratch']
  %s0 = inlined_call_operand.vmem [shape: f32[2,4,10,128], index: 0, kind: input, shape index: {}]
  %s1 = inlined_call_operand.vmem [shape: f32[4,27], index: 1, kind: input, shape index: {}]
  %s2 = inlined_call_operand.vmem [shape: f32[8,4], index: 2, kind: input, shape index: {}]
  %s3 = inlined_call_operand.vmem [shape: f32[8], index: 3, kind: input, shape index: {}]
  %s4 = inlined_call_operand.hbm [shape: f32[2,8,8,128], index: 4, kind: output, shape index: {}]
  %s5 = sld [smem:[#allocation0]]
  $region65: #{tpu_custom_call.1} parent=0
    _
  %s7 = ssub.s32 1, %s5
  %s8 = scalar_select 0, %s7, %s5
  $region1: #{tpu_custom_call.1} parent=0
    #allocation2 [shape = 'u8[2048]{0}', space=smem, size = 0x800, scoped, tag = 'input window, operand 1, single buffered']
    #allocation3 [shape = 's32[2]{0}', space=sflag, size = 0x8, scoped, tag = 'scoped memory for tpu_custom_call.1']
    #allocation4 [shape = 's32[2]{0}', space=sflag, size = 0x8, scoped, tag = 'scoped memory for tpu_custom_call.1']
    #allocation5 [shape = 'u8[4096]{0}', space=smem, size = 0x1000, scoped, tag = 'input window, operand 2, single buffered']
    #allocation6 [shape = 's32[1]{0}', space=sflag, size = 0x4, scoped, tag = 'scoped memory for tpu_custom_call.1']
    #allocation7 [shape = 'u8[512]{0}', space=smem, size = 0x200, scoped, tag = 'input window, operand 3, single buffered']
    #allocation8 [shape = 'u8[65536]{0}', space=vmem, size = 0x10000, scoped, tag = 'output window, operand 0']
    %9 = vsyncpa [#allocation4], 0
    %10 = vsyncpa [#allocation6], 0
    %11 = vsyncpa [#allocation3], 0
    %s12 = scalar_lea.sflag [#allocation3], 1
    %13 = vsyncpa %s12, 0
    loop: start=0, step=1, limit=10
    $region2: #{tpu_custom_call.1} parent=1 // loop_pre_header
      _
    $region3: #{tpu_custom_call.1} parent=1 // loop_header
      %s15 = sphi 0, %s19
      %p16 = scmp.ge.s32.totalorder %s15, 10
      %s22 = sphi 0, %s34
      %s23 = sphi 0, %s30
      %s24 = sphi 0, %s22
      %s25 = sphi 0, %s23
      %s26 = sphi 0, %s24
      %s27 = sphi 0, %s25
      %s39 = sphi 0, %s41
      %s42 = sphi 0, %s39
      %s43 = sphi 0, %s42
      %s59 = sphi 0, %s43
      %s63 = sphi 0, %s63
      %s65 = sphi 0, %s63
      %s66 = sphi 0, %s65
      %s80 = sphi 0, %s66
      %s84 = sphi 0, %s84
      %s86 = sphi 0, %s84
      %s87 = sphi 0, %s86
      %s101 = sphi 0, %s87
      %s105 = sphi 0, %s105
      %s107 = sphi 0, %s105
      %s108 = sphi 0, %s107
      %s122 = sphi 0, %s108
      %s128 = sphi 0, %s130
      %s131 = sphi 0, %s128
      %s132 = sphi 0, %s131
      %s148 = sphi 0, %s132
    $region4: #{tpu_custom_call.1} parent=1 // loop_header_branch
      %18 = sbr.rel (%p16) target = $region8
    $region5: #{tpu_custom_call.1} parent=1 // loop_body
      %s20 = ssub.s32 %s15, 1
      %s21 = ssub.s32 %s15, 2
      %s28 = sadd.s32 1, %s23
      %p29 = scmp.ge.s32.totalorder %s28, 4
      %s30 = scalar_select %p29, 0, %s28
      %s31 = sadd.s32 1, %s22
      %s32 = scalar_select %p29, %s31, %s22
      %p33 = scmp.ge.s32.totalorder %s32, 2
      %s34 = scalar_select %p33, 0, %s32
      %s35 = ssub.s32 %s22, %s34
      %s36 = ssub.s32 %s23, %s30
      %s37 = sor.u32 %s35, %s36
      %p38 = scmp.eq.s32.totalorder %s37, 0
      %s40 = sadd.s32 %s39, 1
      %s41 = scalar_select %p38, %s39, %s40
      %p44 = pneg %p38
      %p45 = scmp.eq.s32.totalorder %s15, 7
      %p46 = por %p44, %p45
      %p47 = scmp.ne.s32.totalorder %s39, %s42
      %p48 = scmp.eq.s32.totalorder %s15, 0
      %p49 = por %p47, %p48
      %p50 = scmp.ne.s32.totalorder %s39, %s42
      %p51 = scmp.eq.s32.totalorder %s20, 7
      %p52 = por %p50, %p51
      %p53 = scmp.ne.s32.totalorder %s42, %s43
      %p54 = scmp.eq.s32.totalorder %s20, 0
      %p55 = por %p53, %p54
      %p56 = scmp.ne.s32.totalorder %s42, %s43
      %p57 = scmp.eq.s32.totalorder %s21, 7
      %p58 = por %p56, %p57
      %p60 = scmp.ne.s32.totalorder %s43, %s59
      %p61 = scmp.eq.s32.totalorder %s21, 0
      %p62 = por %p60, %p61
      %s64 = sadd.s32 %s63, 1
      %p67 = scmp.eq.s32.totalorder %s15, 7
      %p68 = scmp.ne.s32.totalorder %s63, %s65
      %p69 = scmp.eq.s32.totalorder %s15, 0
      %p70 = por %p68, %p69
      %p71 = scmp.ne.s32.totalorder %s63, %s65
      %p72 = scmp.eq.s32.totalorder %s20, 7
      %p73 = por %p71, %p72
      %p74 = scmp.ne.s32.totalorder %s65, %s66
      %p75 = scmp.eq.s32.totalorder %s20, 0
      %p76 = por %p74, %p75
      %p77 = scmp.ne.s32.totalorder %s65, %s66
      %p78 = scmp.eq.s32.totalorder %s21, 7
      %p79 = por %p77, %p78
      %p81 = scmp.ne.s32.totalorder %s66, %s80
      %p82 = scmp.eq.s32.totalorder %s21, 0
      %p83 = por %p81, %p82
      %s85 = sadd.s32 %s84, 1
      %p88 = scmp.eq.s32.totalorder %s15, 7
      %p89 = scmp.ne.s32.totalorder %s84, %s86
      %p90 = scmp.eq.s32.totalorder %s15, 0
      %p91 = por %p89, %p90
      %p92 = scmp.ne.s32.totalorder %s84, %s86
      %p93 = scmp.eq.s32.totalorder %s20, 7
      %p94 = por %p92, %p93
      %p95 = scmp.ne.s32.totalorder %s86, %s87
      %p96 = scmp.eq.s32.totalorder %s20, 0
      %p97 = por %p95, %p96
      %p98 = scmp.ne.s32.totalorder %s86, %s87
      %p99 = scmp.eq.s32.totalorder %s21, 7
      %p100 = por %p98, %p99
      %p102 = scmp.ne.s32.totalorder %s87, %s101
      %p103 = scmp.eq.s32.totalorder %s21, 0
      %p104 = por %p102, %p103
      %s106 = sadd.s32 %s105, 1
      %p109 = scmp.eq.s32.totalorder %s15, 7
      %p110 = scmp.ne.s32.totalorder %s105, %s107
      %p111 = scmp.eq.s32.totalorder %s15, 0
      %p112 = por %p110, %p111
      %p113 = scmp.ne.s32.totalorder %s105, %s107
      %p114 = scmp.eq.s32.totalorder %s20, 7
      %p115 = por %p113, %p114
      %p116 = scmp.ne.s32.totalorder %s107, %s108
      %p117 = scmp.eq.s32.totalorder %s20, 0
      %p118 = por %p116, %p117
      %p119 = scmp.ne.s32.totalorder %s107, %s108
      %p120 = scmp.eq.s32.totalorder %s21, 7
      %p121 = por %p119, %p120
      %p123 = scmp.ne.s32.totalorder %s108, %s122
      %p124 = scmp.eq.s32.totalorder %s21, 0
      %p125 = por %p123, %p124
      %s126 = ssub.s32 %s22, %s34
      %p127 = scmp.eq.s32.totalorder %s126, 0
      %s129 = sadd.s32 %s128, 1
      %s130 = scalar_select %p127, %s128, %s129
      %p133 = pneg %p127
      %p134 = scmp.eq.s32.totalorder %s15, 7
      %p135 = por %p133, %p134
      %p136 = scmp.ne.s32.totalorder %s128, %s131
      %p137 = scmp.eq.s32.totalorder %s15, 0
      %p138 = por %p136, %p137
      %p139 = scmp.ne.s32.totalorder %s128, %s131
      %p140 = scmp.eq.s32.totalorder %s20, 7
      %p141 = por %p139, %p140
      %p142 = scmp.ne.s32.totalorder %s131, %s132
      %p143 = scmp.eq.s32.totalorder %s20, 0
      %p144 = por %p142, %p143
      %p145 = scmp.ne.s32.totalorder %s131, %s132
      %p146 = scmp.eq.s32.totalorder %s21, 7
      %p147 = por %p145, %p146
      %p149 = scmp.ne.s32.totalorder %s132, %s148
      %p150 = scmp.eq.s32.totalorder %s21, 0
      %p151 = por %p149, %p150
      %p152 = scmp.le.s32.totalorder 1, %s15
      %p153 = scmp.lt.s32.totalorder %s15, 9
      %p154 = pnand %p152, %p153
      %p155 = pneg %p154
      // Predicated region
      $region9: #{tpu_custom_call.1} parent=5 // pred_check
        _
      $region10: #{tpu_custom_call.1} parent=5 // pred_check_branch
        %157 = sbr.rel (%p154) target = $region12
      $region11: #{tpu_custom_call.1} parent=5 // pred_region
        %s158 = ssub.s32 %s15, 1
        // Predicated region
        $region13: #{tpu_custom_call.1} parent=11 // pred_check
          %p159 = pneg %p76
        $region14: #{tpu_custom_call.1} parent=11 // pred_check_branch
          %161 = sbr.rel (%p159) target = $region16
        $region15: #{tpu_custom_call.1} parent=11 // pred_region
          %s163 = ssub.s32 64, 64
          %164 = vsyncadd [#allocation4], %s163
          %s166 = sshll.u32 %s1, 4
          %s167 = int_to_ptr.vmem [resolvable:$true] %s166
          %169 = dma.vmem_to_smem %s167, 64, [#allocation2], [#allocation4]
        $region16: #{tpu_custom_call.1} parent=11 // pred_fallthru
          _
        // Predicated region
        $region17: #{tpu_custom_call.1} parent=11 // pred_check
          %p170 = pneg %p97
        $region18: #{tpu_custom_call.1} parent=11 // pred_check_branch
          %172 = sbr.rel (%p170) target = $region20
        $region19: #{tpu_custom_call.1} parent=11 // pred_region
          %s174 = ssub.s32 128, 128
          %175 = vsyncadd [#allocation6], %s174
          %s177 = sshll.u32 %s2, 4
          %s178 = int_to_ptr.vmem [resolvable:$true] %s177
          %180 = dma.vmem_to_smem %s178, 128, [#allocation5], [#allocation6]
        $region20: #{tpu_custom_call.1} parent=11 // pred_fallthru
          _
        // Predicated region
        $region21: #{tpu_custom_call.1} parent=11 // pred_check
          %p181 = pneg %p118
        $region22: #{tpu_custom_call.1} parent=11 // pred_check_branch
          %183 = sbr.rel (%p181) target = $region24
        $region23: #{tpu_custom_call.1} parent=11 // pred_region
          %s185 = ssub.s32 16, 16
          %186 = vsyncadd [#allocation6], %s185
          %s188 = sshll.u32 %s3, 4
          %s189 = int_to_ptr.vmem [resolvable:$true] %s188
          %191 = dma.vmem_to_smem %s189, 16, [#allocation7], [#allocation6]
        $region24: #{tpu_custom_call.1} parent=11 // pred_fallthru
          _
      $region12: #{tpu_custom_call.1} parent=5 // pred_fallthru
        _
      %p192 = scmp.lt.s32.totalorder %s15, 8
      // Predicated region
      $region25: #{tpu_custom_call.1} parent=5 // pred_check
        %p193 = pneg %p192
      $region26: #{tpu_custom_call.1} parent=5 // pred_check_branch
        %195 = sbr.rel (%p193) target = $region28
      $region27: #{tpu_custom_call.1} parent=5 // pred_region
        // Predicated region
        $region29: #{tpu_custom_call.1} parent=27 // pred_check
          %p196 = pneg %p49
        $region30: #{tpu_custom_call.1} parent=27 // pred_check_branch
          %198 = sbr.rel (%p196) target = $region32
        $region31: #{tpu_custom_call.1} parent=27 // pred_region
          %p199 = scmp.lt.s32.totalorder %s22, 1
          %s200 = scalar_select %p199, %s22, 1
          %p201 = scmp.lt.s32.totalorder %s23, 3
          %s202 = scalar_select %p201, %s23, 3
          %s203 = smul.addr %s202, 2
          %s204 = smul.addr %s200, 8
          %s205 = sadd.s32 %s203, %s204
          %s206 = smul.addr %s205, 8
          %s207 = scalar_lea.vmem %s0, %s206
        $region32: #{tpu_custom_call.1} parent=27 // pred_fallthru
          _
      $region28: #{tpu_custom_call.1} parent=5 // pred_fallthru
        _
      %p208 = scmp.le.s32.totalorder 1, %s15
      %p209 = scmp.lt.s32.totalorder %s15, 9
      %p210 = pnand %p208, %p209
      %p211 = pneg %p210
      // Predicated region
      $region33: #{tpu_custom_call.1} parent=5 // pred_check
        _
      $region34: #{tpu_custom_call.1} parent=5 // pred_check_branch
        %213 = sbr.rel (%p210) target = $region36
      $region35: #{tpu_custom_call.1} parent=5 // pred_region
        %s214 = ssub.s32 %s15, 1
        // Predicated region
        $region37: #{tpu_custom_call.1} parent=35 // pred_check
          %p215 = pneg %p76
        $region38: #{tpu_custom_call.1} parent=35 // pred_check_branch
          %217 = sbr.rel (%p215) target = $region40
        $region39: #{tpu_custom_call.1} parent=35 // pred_region
          %218 = dma.done [#allocation4], 64
        $region40: #{tpu_custom_call.1} parent=35 // pred_fallthru
          _
        // Predicated region
        $region41: #{tpu_custom_call.1} parent=35 // pred_check
          %p219 = pneg %p97
        $region42: #{tpu_custom_call.1} parent=35 // pred_check_branch
          %221 = sbr.rel (%p219) target = $region44
        $region43: #{tpu_custom_call.1} parent=35 // pred_region
          %222 = dma.done [#allocation6], 128
        $region44: #{tpu_custom_call.1} parent=35 // pred_fallthru
          _
        // Predicated region
        $region45: #{tpu_custom_call.1} parent=35 // pred_check
          %p223 = pneg %p118
        $region46: #{tpu_custom_call.1} parent=35 // pred_check_branch
          %225 = sbr.rel (%p223) target = $region48
        $region47: #{tpu_custom_call.1} parent=35 // pred_region
          %226 = dma.done [#allocation6], 16
        $region48: #{tpu_custom_call.1} parent=35 // pred_fallthru
          _
        %227 = sfence
        %p228 = scmp.lt.s32.totalorder %s24, 1
        %s229 = scalar_select %p228, %s24, 1
        %p230 = scmp.lt.s32.totalorder %s25, 3
        %s231 = scalar_select %p230, %s25, 3
        %s232 = smul.addr %s231, 2
        %s233 = smul.addr %s229, 8
        %s234 = sadd.s32 %s232, %s233
        %s235 = smul.addr %s234, 8
        %s236 = scalar_lea.vmem %s0, %s235
        %p237 = pneg %p55
        %p238 = pneg %p52
        %p239 = pneg %p76
        %p240 = pneg %p73
        %p241 = pneg %p97
        %p242 = pneg %p94
        %p243 = pneg %p118
        %p244 = pneg %p115
        %p245 = pneg %p144
        %p246 = pneg %p141
        %s247 = sand.u32 %s131, 1
        %s248 = scalar_lea.sflag [#allocation3], %s247
        %s249 = sand.u32 %s131, 1
        %s250 = smul.addr %s249, 64
        %s251 = scalar_lea.vmem [#allocation8], %s250
        %p252 = scmp.lt.s32.totalorder %s24, 1
        %s253 = scalar_select %p252, %s24, 1
        %p254 = scmp.lt.s32.totalorder %s25, 3
        %s255 = scalar_select %p254, %s25, 3
        %s256 = smul.addr %s255, 2
        %s257 = smul.addr %s253, 8
        %s258 = sadd.s32 %s256, %s257
        %s259 = smul.addr %s258, 8
        %s260 = scalar_lea.vmem %s0, %s259
        %p261 = scmp.eq.s32.totalorder %s25, 0
        // Predicated region
        $region49: #{tpu_custom_call.1} parent=35 // pred_check
          %p262 = pneg %p261
        $region50: #{tpu_custom_call.1} parent=35 // pred_check_branch
          %264 = sbr.rel (%p262) target = $region52
        $region51: #{tpu_custom_call.1} parent=35 // pred_region
          %s265 = sld [smem:[#allocation7]]
          %v266 = vstv %s265
          %267 = vst [vmem:[%s251] sm:$0xff] %v266
          %s268 = sld [smem:[#allocation7 + $0x1]]
          %v269 = vstv %s268
          %s270 = scalar_lea.vmem %s251, 8 [#allocation8]
          %271 = vst [vmem:[%s270] sm:$0xff] %v269
          %s272 = sld [smem:[#allocation7 + $0x2]]
          %v273 = vstv %s272
          %s274 = scalar_lea.vmem %s251, 16 [#allocation8]
          %275 = vst [vmem:[%s274] sm:$0xff] %v273
          %s276 = sld [smem:[#allocation7 + $0x3]]
          %v277 = vstv %s276
          %s278 = scalar_lea.vmem %s251, 24 [#allocation8]
          %279 = vst [vmem:[%s278] sm:$0xff] %v277
          %s280 = sld [smem:[#allocation7 + $0x4]]
          %v281 = vstv %s280
          %s282 = scalar_lea.vmem %s251, 32 [#allocation8]
          %283 = vst [vmem:[%s282] sm:$0xff] %v281
          %s284 = sld [smem:[#allocation7 + $0x5]]
          %v285 = vstv %s284
          %s286 = scalar_lea.vmem %s251, 40 [#allocation8]
          %287 = vst [vmem:[%s286] sm:$0xff] %v285
          %s288 = sld [smem:[#allocation7 + $0x6]]
          %v289 = vstv %s288
          %s290 = scalar_lea.vmem %s251, 48 [#allocation8]
          %291 = vst [vmem:[%s290] sm:$0xff] %v289
          %s292 = sld [smem:[#allocation7 + $0x7]]
          %v293 = vstv %s292
          %s294 = scalar_lea.vmem %s251, 56 [#allocation8]
          %295 = vst [vmem:[%s294] sm:$0xff] %v293
        $region52: #{tpu_custom_call.1} parent=35 // pred_fallthru
          _
        %v296 = vld [vmem:[%s260] sm:$0xff]
        %297 = vrot.lane.b32.xlu0 %v296, 127
        %v298 = vpop.permute.xlu0 %297
        %299 = vrot.lane.b32.xlu0 %v296, 126
        %v300 = vpop.permute.xlu0 %299
        %s301 = smul.u32 %s25, 128
        %s302 = sld [smem:[#allocation2 + %s301]]
        %v303 = vstv %s302
        %v304 = vmul.f32 %v296, %v303
        %s305 = sadd.s32 %s301, 1
        %s306 = sld [smem:[#allocation2 + %s305]]
        %v307 = vstv %s306
        %v308 = vmul.f32 %v298, %v307
        %v309 = vadd.f32 %v304, %v308
        %s310 = sadd.s32 %s301, 2
        %s311 = sld [smem:[#allocation2 + %s310]]
        %v312 = vstv %s311
        %v313 = vmul.f32 %v300, %v312
        %v314 = vadd.f32 %v309, %v313
        %s315 = sadd.s32 %s301, 3
        %s316 = sld [smem:[#allocation2 + %s315]]
        %v317 = vstv %s316
        %v318 = vmul.f32 %v296, %v317
        %s319 = sadd.s32 %s301, 4
        %s320 = sld [smem:[#allocation2 + %s319]]
        %v321 = vstv %s320
        %v322 = vmul.f32 %v298, %v321
        %v323 = vadd.f32 %v318, %v322
        %s324 = sadd.s32 %s301, 5
        %s325 = sld [smem:[#allocation2 + %s324]]
        %v326 = vstv %s325
        %v327 = vmul.f32 %v300, %v326
        %v328 = vadd.f32 %v323, %v327
        %329 = vrot.lane.b32.xlu0 %v328, 118
        %v330 = vpop.permute.xlu0 %329
        %v331 = vadd.f32 %v314, %v330
        %s332 = sadd.s32 %s301, 6
        %s333 = sld [smem:[#allocation2 + %s332]]
        %v334 = vstv %s333
        %v335 = vmul.f32 %v296, %v334
        %s336 = sadd.s32 %s301, 7
        %s337 = sld [smem:[#allocation2 + %s336]]
        %v338 = vstv %s337
        %v339 = vmul.f32 %v298, %v338
        %v340 = vadd.f32 %v335, %v339
        %s341 = sadd.s32 %s301, 8
        %s342 = sld [smem:[#allocation2 + %s341]]
        %v343 = vstv %s342
        %v344 = vmul.f32 %v300, %v343
        %v345 = vadd.f32 %v340, %v344
        %346 = vrot.lane.b32.xlu0 %v345, 108
        %v347 = vpop.permute.xlu0 %346
        %v348 = vadd.f32 %v331, %v347
        %v349 = vld [vmem:[%s260 + $0x1] sm:$0xff]
        %350 = vrot.lane.b32.xlu0 %v349, 127
        %v351 = vpop.permute.xlu0 %350
        %352 = vrot.lane.b32.xlu0 %v349, 126
        %v353 = vpop.permute.xlu0 %352
        %s354 = sadd.s32 %s301, 9
        %s355 = sld [smem:[#allocation2 + %s354]]
        %v356 = vstv %s355
        %v357 = vmul.f32 %v349, %v356
        %s358 = sadd.s32 %s301, 10
        %s359 = sld [smem:[#allocation2 + %s358]]
        %v360 = vstv %s359
        %v361 = vmul.f32 %v351, %v360
        %v362 = vadd.f32 %v357, %v361
        %s363 = sadd.s32 %s301, 11
        %s364 = sld [smem:[#allocation2 + %s363]]
        %v365 = vstv %s364
        %v366 = vmul.f32 %v353, %v365
        %v367 = vadd.f32 %v362, %v366
        %v368 = vadd.f32 %v348, %v367
        %s369 = sadd.s32 %s301, 12
        %s370 = sld [smem:[#allocation2 + %s369]]
        %v371 = vstv %s370
        %v372 = vmul.f32 %v349, %v371
        %s373 = sadd.s32 %s301, 13
        %s374 = sld [smem:[#allocation2 + %s373]]
        %v375 = vstv %s374
        %v376 = vmul.f32 %v351, %v375
        %v377 = vadd.f32 %v372, %v376
        %s378 = sadd.s32 %s301, 14
        %s379 = sld [smem:[#allocation2 + %s378]]
        %v380 = vstv %s379
        %v381 = vmul.f32 %v353, %v380
        %v382 = vadd.f32 %v377, %v381
        %383 = vrot.lane.b32.xlu0 %v382, 118
        %v384 = vpop.permute.xlu0 %383
        %v385 = vadd.f32 %v368, %v384
        %s386 = sadd.s32 %s301, 15
        %s387 = sld [smem:[#allocation2 + %s386]]
        %v388 = vstv %s387
        %v389 = vmul.f32 %v349, %v388
        %s390 = sadd.s32 %s301, 16
        %s391 = sld [smem:[#allocation2 + %s390]]
        %v392 = vstv %s391
        %v393 = vmul.f32 %v351, %v392
        %v394 = vadd.f32 %v389, %v393
        %s395 = sadd.s32 %s301, 17
        %s396 = sld [smem:[#allocation2 + %s395]]
        %v397 = vstv %s396
        %v398 = vmul.f32 %v353, %v397
        %v399 = vadd.f32 %v394, %v398
        %400 = vrot.lane.b32.xlu0 %v399, 108
        %v401 = vpop.permute.xlu0 %400
        %v402 = vadd.f32 %v385, %v401
        %v403 = vld [vmem:[%s260 + $0x2] sm:$0xff]
        %404 = vrot.lane.b32.xlu0 %v403, 127
        %v405 = vpop.permute.xlu0 %404
        %406 = vrot.lane.b32.xlu0 %v403, 126
        %v407 = vpop.permute.xlu0 %406
        %s408 = sadd.s32 %s301, 18
        %s409 = sld [smem:[#allocation2 + %s408]]
        %v410 = vstv %s409
        %v411 = vmul.f32 %v403, %v410
        %s412 = sadd.s32 %s301, 19
        %s413 = sld [smem:[#allocation2 + %s412]]
        %v414 = vstv %s413
        %v415 = vmul.f32 %v405, %v414
        %v416 = vadd.f32 %v411, %v415
        %s417 = sadd.s32 %s301, 20
        %s418 = sld [smem:[#allocation2 + %s417]]
        %v419 = vstv %s418
        %v420 = vmul.f32 %v407, %v419
        %v421 = vadd.f32 %v416, %v420
        %v422 = vadd.f32 %v402, %v421
        %s423 = sadd.s32 %s301, 21
        %s424 = sld [smem:[#allocation2 + %s423]]
        %v425 = vstv %s424
        %v426 = vmul.f32 %v403, %v425
        %s427 = sadd.s32 %s301, 22
        %s428 = sld [smem:[#allocation2 + %s427]]
        %v429 = vstv %s428
        %v430 = vmul.f32 %v405, %v429
        %v431 = vadd.f32 %v426, %v430
        %s432 = sadd.s32 %s301, 23
        %s433 = sld [smem:[#allocation2 + %s432]]
        %v434 = vstv %s433
        %v435 = vmul.f32 %v407, %v434
        %v436 = vadd.f32 %v431, %v435
        %437 = vrot.lane.b32.xlu0 %v436, 118
        %v438 = vpop.permute.xlu0 %437
        %v439 = vadd.f32 %v422, %v438
        %s440 = sadd.s32 %s301, 24
        %s441 = sld [smem:[#allocation2 + %s440]]
        %v442 = vstv %s441
        %v443 = vmul.f32 %v403, %v442
        %s444 = sadd.s32 %s301, 25
        %s445 = sld [smem:[#allocation2 + %s444]]
        %v446 = vstv %s445
        %v447 = vmul.f32 %v405, %v446
        %v448 = vadd.f32 %v443, %v447
        %s449 = sadd.s32 %s301, 26
        %s450 = sld [smem:[#allocation2 + %s449]]
        %v451 = vstv %s450
        %v452 = vmul.f32 %v407, %v451
        %v453 = vadd.f32 %v448, %v452
        %454 = vrot.lane.b32.xlu0 %v453, 108
        %v455 = vpop.permute.xlu0 %454
        %v456 = vadd.f32 %v439, %v455
        %v457 = vld [vmem:[%s251] sm:$0xff]
        %s458 = sld [smem:[#allocation5 + %s25]]
        %v459 = vstv %s458
        %v460 = vmul.f32 %v459, %v456
        %v461 = vadd.f32 %v457, %v460
        %462 = vst [vmem:[%s251] sm:$0xff] %v461
        %s463 = scalar_lea.vmem %s251, 8 [#allocation8]
        %v464 = vld [vmem:[%s463] sm:$0xff]
        %s465 = sshra.s32 %s25, 7
        %s466 = sand.u32 %s25, 127
        %s467 = sadd.s32 %s465, 1
        %s468 = smul.u32 %s467, 128
        %s469 = sshra.s32 %s25, 7
        %s470 = sand.u32 %s25, 127
        %s471 = sadd.s32 %s468, %s470
        %s472 = sld [smem:[#allocation5 + %s471]]
        %v473 = vstv %s472
        %v474 = vmul.f32 %v473, %v456
        %v475 = vadd.f32 %v464, %v474
        %476 = vst [vmem:[%s463] sm:$0xff] %v475
        %s477 = scalar_lea.vmem %s251, 16 [#allocation8]
        %v478 = vld [vmem:[%s477] sm:$0xff]
        %s479 = sadd.s32 %s465, 2
        %s480 = smul.u32 %s479, 128
        %s481 = sadd.s32 %s480, %s470
        %s482 = sld [smem:[#allocation5 + %s481]]
        %v483 = vstv %s482
        %v484 = vmul.f32 %v483, %v456
        %v485 = vadd.f32 %v478, %v484
        %486 = vst [vmem:[%s477] sm:$0xff] %v485
        %s487 = scalar_lea.vmem %s251, 24 [#allocation8]
        %v488 = vld [vmem:[%s487] sm:$0xff]
        %s489 = sadd.s32 %s465, 3
        %s490 = smul.u32 %s489, 128
        %s491 = sadd.s32 %s490, %s470
        %s492 = sld [smem:[#allocation5 + %s491]]
        %v493 = vstv %s492
        %v494 = vmul.f32 %v493, %v456
        %v495 = vadd.f32 %v488, %v494
        %496 = vst [vmem:[%s487] sm:$0xff] %v495
        %s497 = scalar_lea.vmem %s251, 32 [#allocation8]
        %v498 = vld [vmem:[%s497] sm:$0xff]
        %s499 = sadd.s32 %s465, 4
        %s500 = smul.u32 %s499, 128
        %s501 = sadd.s32 %s500, %s470
        %s502 = sld [smem:[#allocation5 + %s501]]
        %v503 = vstv %s502
        %v504 = vmul.f32 %v503, %v456
        %v505 = vadd.f32 %v498, %v504
        %506 = vst [vmem:[%s497] sm:$0xff] %v505
        %s507 = scalar_lea.vmem %s251, 40 [#allocation8]
        %v508 = vld [vmem:[%s507] sm:$0xff]
        %s509 = sadd.s32 %s465, 5
        %s510 = smul.u32 %s509, 128
        %s511 = sadd.s32 %s510, %s470
        %s512 = sld [smem:[#allocation5 + %s511]]
        %v513 = vstv %s512
        %v514 = vmul.f32 %v513, %v456
        %v515 = vadd.f32 %v508, %v514
        %516 = vst [vmem:[%s507] sm:$0xff] %v515
        %s517 = scalar_lea.vmem %s251, 48 [#allocation8]
        %v518 = vld [vmem:[%s517] sm:$0xff]
        %s519 = sadd.s32 %s465, 6
        %s520 = smul.u32 %s519, 128
        %s521 = sadd.s32 %s520, %s470
        %s522 = sld [smem:[#allocation5 + %s521]]
        %v523 = vstv %s522
        %v524 = vmul.f32 %v523, %v456
        %v525 = vadd.f32 %v518, %v524
        %526 = vst [vmem:[%s517] sm:$0xff] %v525
        %s527 = scalar_lea.vmem %s251, 56 [#allocation8]
        %v528 = vld [vmem:[%s527] sm:$0xff]
        %s529 = sadd.s32 %s465, 7
        %s530 = smul.u32 %s529, 128
        %s531 = sadd.s32 %s530, %s470
        %s532 = sld [smem:[#allocation5 + %s531]]
        %v533 = vstv %s532
        %v534 = vmul.f32 %v533, %v456
        %v535 = vadd.f32 %v528, %v534
        %536 = vst [vmem:[%s527] sm:$0xff] %v535
        %s537 = sand.u32 %s131, 1
        %s538 = scalar_lea.sflag [#allocation3], %s537
        %s539 = sand.u32 %s131, 1
        %s540 = smul.addr %s539, 64
        %s541 = scalar_lea.vmem [#allocation8], %s540
        // Predicated region
        $region53: #{tpu_custom_call.1} parent=35 // pred_check
          %p542 = pneg %p141
        $region54: #{tpu_custom_call.1} parent=35 // pred_check_branch
          %544 = sbr.rel (%p542) target = $region56
        $region55: #{tpu_custom_call.1} parent=35 // pred_region
          %s546 = ssub.s32 1024, 1024
          %547 = vsyncadd %s538, %s546
          %s548 = smul.addr %s24, 8
          %s549 = smul.addr %s548, 128
          %s550 = scalar_lea.hbm %s4, %s549
          %s551 = sshll.u32 %s541, 4
          %s552 = int_to_ptr.vmem [resolvable:$true] %s551
          %557 = dma.vmem_to_hbm [thread:$0]  %s552, 1024, %s550, %s538, 128, 128, 8
        $region56: #{tpu_custom_call.1} parent=35 // pred_fallthru
          _
      $region36: #{tpu_custom_call.1} parent=5 // pred_fallthru
        _
      %p558 = scmp.le.s32.totalorder 2, %s15
      // Predicated region
      $region57: #{tpu_custom_call.1} parent=5 // pred_check
        %p559 = pneg %p558
      $region58: #{tpu_custom_call.1} parent=5 // pred_check_branch
        %561 = sbr.rel (%p559) target = $region60
      $region59: #{tpu_custom_call.1} parent=5 // pred_region
        %s562 = ssub.s32 %s15, 2
        // Predicated region
        $region61: #{tpu_custom_call.1} parent=59 // pred_check
          %p563 = pneg %p147
        $region62: #{tpu_custom_call.1} parent=59 // pred_check_branch
          %565 = sbr.rel (%p563) target = $region64
        $region63: #{tpu_custom_call.1} parent=59 // pred_region
          %s566 = sand.u32 %s132, 1
          %s567 = scalar_lea.sflag [#allocation3], %s566
          %s568 = sand.u32 %s132, 1
          %s569 = smul.addr %s568, 64
          %s570 = scalar_lea.vmem [#allocation8], %s569
          %571 = dma.done %s567, 1024
        $region64: #{tpu_custom_call.1} parent=59 // pred_fallthru
          _
      $region60: #{tpu_custom_call.1} parent=5 // pred_fallthru
        _
    $region6: #{tpu_custom_call.1} parent=1 // loop_footer
      %s19 = sadd.s32 1, %s15
    $region7: #{tpu_custom_call.1} parent=1 // loop_footer_branch
      %14 = sbr.rel target = $region3
    $region8: #{tpu_custom_call.1} parent=1 // loop_exit
      _
    %572 = vsyncpa [#allocation3], 1
    %s573 = scalar_lea.sflag [#allocation3], 1
    %574 = vsyncpa %s573, 1
    %575 = vsyncpa [#allocation4], 1
    %s576 = scalar_lea.sflag [#allocation4], 1
    %577 = vsyncpa %s576, 1
    %578 = vsyncpa [#allocation6], 1

</llo_original>
